<compile_context>
chip_gen: v6e
topology: v6e:2x2x1
jax: 0.10.0
libtpu: 0.0.40
codegen_flags: <defaults>
</compile_context>

<pallas_src>
import functools

import jax
import jax.numpy as jnp
from jax import lax
from jax.experimental import pallas as pl
from jax.experimental.pallas import tpu as pltpu


def conv_gemm_bias_relu_kernel(p_ref, w_ref, b_ref, o_ref):
    """p_ref: (N, K, S) f32, w_ref: (O, K) f32, b_ref: (O, 1) f32, o_ref: (N, O, S) f32."""
    w = w_ref[...]
    b = b_ref[...]
    for n in range(p_ref.shape[0]):  # N is tiny and static -> unrolled
        acc = jnp.dot(w, p_ref[n], preferred_element_type=jnp.float32)  # (O, S)
        o_ref[n] = jnp.maximum(acc + b, 0.0)


@functools.partial(jax.jit, static_argnames=("stride", "padding"))
def conv2d_relu(x_nchw, w_oikk, bias, *, stride=1, padding=1):
    """Conv2d(stride=1, padding=1) + ReLU. x_nchw: (N,C,H,W), w_oikk: (O,C,KH,KW)."""
    N, C, H, W = x_nchw.shape
    O, Cw, KH, KW = w_oikk.shape
    assert C == Cw and stride == 1
    H_out = (H + 2 * padding - KH) // stride + 1
    W_out = (W + 2 * padding - KW) // stride + 1
    K = C * KH * KW
    S = H_out * W_out

    # --- im2col: one fused XLA op, NCHW layout (no transposes needed). --------
    # Feature order of the patch dim is channel-major (c, kh, kw), matching
    # w_oikk.reshape(O, K); the allclose check below guards this as a regression.
    patches = lax.conv_general_dilated_patches(
        x_nchw.astype(jnp.float32), (KH, KW), (stride, stride),
        padding=((padding, padding), (padding, padding)),
        dimension_numbers=("NCHW", "OIHW", "NCHW"),
    )  # (N, K, H_out, W_out)
    p3d = patches.reshape(N, K, S)

    w_mat = w_oikk.reshape(O, K).astype(jnp.float32)
    b_col = bias.astype(jnp.float32).reshape(O, 1)

    cost = pl.CostEstimate(
        flops=2 * N * O * K * S,
        transcendentals=0,
        bytes_accessed=(N * K * S + O * K + O + N * O * S) * 4,
    )

    out = pl.pallas_call(
        conv_gemm_bias_relu_kernel,
        out_shape=jax.ShapeDtypeStruct((N, O, S), jnp.float32),
        grid_spec=pl.GridSpec(
            grid=(1,),  # single step: everything fits in VMEM on all generations
            in_specs=[
                pl.BlockSpec((N, K, S), lambda i: (0, 0, 0)),  # full-array blocks
                pl.BlockSpec((O, K), lambda i: (0, 0)),
                pl.BlockSpec((O, 1), lambda i: (0, 0)),
            ],
            out_specs=pl.BlockSpec((N, O, S), lambda i: (0, 0, 0)),
        ),
        compiler_params=pltpu.CompilerParams(
            dimension_semantics=("arbitrary",)),
        cost_estimate=cost,
    )(p3d, w_mat, b_col)

    return out.reshape(N, O, H_out, W_out)  # already NCHW


def reference_conv2d_relu(x_nchw, w_oikk, bias, *, padding=1):
    y = lax.conv_general_dilated(
        x_nchw, w_oikk,
        window_strides=(1, 1),
        padding=((padding, padding), (padding, padding)),
        dimension_numbers=("NCHW", "OIHW", "NCHW"),
    )
    y = y + bias.reshape(1, -1, 1, 1)
    return jnp.maximum(y, 0.0)


if __name__ == "__main__":
    key = jax.random.PRNGKey(0)
    kx, kw, kb = jax.random.split(key, 3)

    # Shapes consistent with the module: Conv2d(3 -> 16, k=5, stride=1, pad=1)
    N, C, H, W = 2, 3, 16, 16
    O, KH, KW = 16, 5, 5

    x = jax.random.normal(kx, (N, C, H, W), dtype=jnp.float32)

    # Deterministic param init, mirroring PyTorch Conv2d's uniform(-1/sqrt(fan_in), +)
    fan_in = C * KH * KW
    bound = 1.0 / (fan_in ** 0.5)
    w = jax.random.uniform(kw, (O, C, KH, KW), minval=-bound, maxval=bound,
                           dtype=jnp.float32)
    b = jax.random.uniform(kb, (O,), minval=-bound, maxval=bound, dtype=jnp.float32)

    y = jax.block_until_ready(conv2d_relu(x, w, b))
    y_ref = reference_conv2d_relu(x, w, b)

    assert y.shape == (N, O, 14, 14), y.shape
    assert jnp.allclose(y, y_ref, atol=1e-2, rtol=1e-2), "mismatch vs reference"

    print("KERNEL_OK")
</pallas_src>

<mosaic_0001>
module attributes {stable_mosaic.version = 11 : i64} {
  func.func @conv_gemm_bias_relu_kernel(%arg0: i32, %arg1: memref<2x75x196xf32, #tpu.memory_space<vmem>>, %arg2: memref<16x75xf32, #tpu.memory_space<vmem>>, %arg3: memref<16x1xf32, #tpu.memory_space<vmem>>, %arg4: memref<2x16x196xf32, #tpu.memory_space<vmem>>) attributes {dimension_semantics = [#tpu.dimension_semantics<arbitrary>], iteration_bounds = array<i64: 1>, scalar_prefetch = 0 : i64, scratch_operands = 0 : i64, tpu.core_type = #tpu.core_type<tc>, window_params = [{pipeline_mode = #tpu.pipeline_mode<synchronous>, transform_indices = @transform_0, window_bounds = array<i64: 2, 75, 196>}, {pipeline_mode = #tpu.pipeline_mode<synchronous>, transform_indices = @transform_1, window_bounds = array<i64: 16, 75>}, {pipeline_mode = #tpu.pipeline_mode<synchronous>, transform_indices = @transform_2, window_bounds = array<i64: 16, 1>}, {pipeline_mode = #tpu.pipeline_mode<synchronous>, transform_indices = @transform_3, window_bounds = array<i64: 2, 16, 196>}]} {
    %c0 = arith.constant 0 : index
    %c0_0 = arith.constant 0 : index
    %0 = vector.load %arg2[%c0, %c0_0] : memref<16x75xf32, #tpu.memory_space<vmem>>, vector<16x75xf32>
    %c0_1 = arith.constant 0 : index
    %c0_2 = arith.constant 0 : index
    %1 = vector.load %arg3[%c0_1, %c0_2] : memref<16x1xf32, #tpu.memory_space<vmem>>, vector<16x1xf32>
    %c0_3 = arith.constant 0 : index
    %c0_4 = arith.constant 0 : index
    %c0_5 = arith.constant 0 : index
    %2 = vector.load %arg1[%c0_3, %c0_4, %c0_5] : memref<2x75x196xf32, #tpu.memory_space<vmem>>, vector<1x75x196xf32>
    %3 = vector.shape_cast %2 : vector<1x75x196xf32> to vector<75x196xf32>
    %cst = arith.constant dense<0.000000e+00> : vector<16x196xf32>
    %4 = tpu.matmul %0, %3, %cst {dimension_numbers = #tpu.dot_dimension_numbers<[1], [0], [0], [1], [0, 0, 1, 1], [], []>} : vector<16x75xf32>, vector<75x196xf32>, vector<16x196xf32> -> vector<16x196xf32>
    %5 = vector.broadcast %1 : vector<16x1xf32> to vector<16x196xf32>
    %6 = arith.addf %4, %5 : vector<16x196xf32>
    %cst_6 = arith.constant 0.000000e+00 : f32
    %7 = vector.broadcast %cst_6 : f32 to vector<16x196xf32>
    %8 = arith.maximumf %6, %7 : vector<16x196xf32>
    %c0_7 = arith.constant 0 : index
    %c0_8 = arith.constant 0 : index
    %c0_9 = arith.constant 0 : index
    %9 = vector.load %arg4[%c0_7, %c0_8, %c0_9] : memref<2x16x196xf32, #tpu.memory_space<vmem>>, vector<1x16x196xf32>
    %10 = vector.shape_cast %9 : vector<1x16x196xf32> to vector<16x196xf32>
    %11 = vector.shape_cast %8 : vector<16x196xf32> to vector<1x16x196xf32>
    tpu.vector_store %arg4[%c0_7, %c0_8, %c0_9], %11 {strides = array<i32>} : memref<2x16x196xf32, #tpu.memory_space<vmem>>, vector<1x16x196xf32>,
    %c1 = arith.constant 1 : index
    %c0_10 = arith.constant 0 : index
    %c0_11 = arith.constant 0 : index
    %12 = vector.load %arg1[%c1, %c0_10, %c0_11] : memref<2x75x196xf32, #tpu.memory_space<vmem>>, vector<1x75x196xf32>
    %13 = vector.shape_cast %12 : vector<1x75x196xf32> to vector<75x196xf32>
    %cst_12 = arith.constant dense<0.000000e+00> : vector<16x196xf32>
    %14 = tpu.matmul %0, %13, %cst_12 {dimension_numbers = #tpu.dot_dimension_numbers<[1], [0], [0], [1], [0, 0, 1, 1], [], []>} : vector<16x75xf32>, vector<75x196xf32>, vector<16x196xf32> -> vector<16x196xf32>
    %15 = vector.broadcast %1 : vector<16x1xf32> to vector<16x196xf32>
    %16 = arith.addf %14, %15 : vector<16x196xf32>
    %cst_13 = arith.constant 0.000000e+00 : f32
    %17 = vector.broadcast %cst_13 : f32 to vector<16x196xf32>
    %18 = arith.maximumf %16, %17 : vector<16x196xf32>
    %c1_14 = arith.constant 1 : index
    %c0_15 = arith.constant 0 : index
    %c0_16 = arith.constant 0 : index
    %19 = vector.load %arg4[%c1_14, %c0_15, %c0_16] : memref<2x16x196xf32, #tpu.memory_space<vmem>>, vector<1x16x196xf32>
    %20 = vector.shape_cast %19 : vector<1x16x196xf32> to vector<16x196xf32>
    %21 = vector.shape_cast %18 : vector<16x196xf32> to vector<1x16x196xf32>
    tpu.vector_store %arg4[%c1_14, %c0_15, %c0_16], %21 {strides = array<i32>} : memref<2x16x196xf32, #tpu.memory_space<vmem>>, vector<1x16x196xf32>,
    return
  }
  func.func @transform_0(%arg0: i32) -> (i32, i32, i32) {
    %c0_i32 = arith.constant 0 : i32
    %c0_i32_0 = arith.constant 0 : i32
    %c0_i32_1 = arith.constant 0 : i32
    %c0_i32_2 = arith.constant 0 : i32
    return %c0_i32, %c0_i32_0, %c0_i32_1 : i32, i32, i32
  }
  func.func @transform_1(%arg0: i32) -> (i32, i32) {
    %c0_i32 = arith.constant 0 : i32
    %c0_i32_0 = arith.constant 0 : i32
    %c0_i32_1 = arith.constant 0 : i32
    return %c0_i32, %c0_i32_0 : i32, i32
  }
  func.func @transform_2(%arg0: i32) -> (i32, i32) {
    %c0_i32 = arith.constant 0 : i32
    %c0_i32_0 = arith.constant 0 : i32
    %c0_i32_1 = arith.constant 0 : i32
    return %c0_i32, %c0_i32_0 : i32, i32
  }
  func.func @transform_3(%arg0: i32) -> (i32, i32, i32) {
    %c0_i32 = arith.constant 0 : i32
    %c0_i32_0 = arith.constant 0 : i32
    %c0_i32_1 = arith.constant 0 : i32
    %c0_i32_2 = arith.constant 0 : i32
    return %c0_i32, %c0_i32_0, %c0_i32_1 : i32, i32, i32
  }
}

</mosaic_0001>

<llo_original>
// kernel: conv2d_relu.1
$region0: #{conv2d_relu.1}
  #allocation0 [shape = 'u32[]', space=smem, size = 0x4, offset = 0x4, fixed_abs, tag = 'smem constant byte address 0x4 - core index']
  #allocation1 [shape = 'u32[144,128]{1,0:T(1,128)}', space=vmem, size = 0x12000, scoped, tag = 'internal scratch']
  %s0 = inlined_call_operand.vmem [shape: f32[2,75,196], index: 0, kind: input, shape index: {}]
  %s1 = inlined_call_operand.vmem [shape: f32[16,75], index: 1, kind: input, shape index: {}]
  %s2 = inlined_call_operand.vmem [shape: f32[16,1], index: 2, kind: input, shape index: {}]
  %s3 = inlined_call_operand.vmem [shape: f32[2,16,196], index: 3, kind: output, shape index: {}]
  %s4 = sld [smem:[#allocation0]]
  $region22: #{conv2d_relu.1} parent=0
    _
  %s6 = ssub.s32 1, %s4
  %s7 = scalar_select 0, %s6, %s4
  // Predicated region
  $region2: #{conv2d_relu.1} parent=0 // pred_check
    _
  $region3: #{conv2d_relu.1} parent=0 // pred_check_branch
    %9 = sbr.rel (0) target = $region5
  $region4: #{conv2d_relu.1} parent=0 // pred_region
    _
  $region5: #{conv2d_relu.1} parent=0 // pred_fallthru
    _
  // Predicated region
  $region6: #{conv2d_relu.1} parent=0 // pred_check
    _
  $region7: #{conv2d_relu.1} parent=0 // pred_check_branch
    %11 = sbr.rel (0) target = $region9
  $region8: #{conv2d_relu.1} parent=0 // pred_region
    _
  $region9: #{conv2d_relu.1} parent=0 // pred_fallthru
    _
  // Predicated region
  $region10: #{conv2d_relu.1} parent=0 // pred_check
    _
  $region11: #{conv2d_relu.1} parent=0 // pred_check_branch
    %13 = sbr.rel (0) target = $region13
  $region12: #{conv2d_relu.1} parent=0 // pred_region
    _
  $region13: #{conv2d_relu.1} parent=0 // pred_fallthru
    _
  %v14 = vld [vmem:[%s1] sm:$0xff]
  %v15 = vld [vmem:[%s1 + $0x8] sm:$0xff]
  %v16 = vld [vmem:[%s2] sm:$0xff]
  %v17 = vld [vmem:[%s2 + $0x8] sm:$0xff]
  %v18 = vld [vmem:[%s0] sm:$0xff]
  %v19 = vld [vmem:[%s0 + $0x8] sm:$0xff]
  %v20 = vld [vmem:[%s0 + $0x10] sm:$0xff]
  %v21 = vld [vmem:[%s0 + $0x18] sm:$0xff]
  %v22 = vld [vmem:[%s0 + $0x20] sm:$0xff]
  %v23 = vld [vmem:[%s0 + $0x28] sm:$0xff]
  %v24 = vld [vmem:[%s0 + $0x30] sm:$0xff]
  %v25 = vld [vmem:[%s0 + $0x38] sm:$0xff]
  %v26 = vld [vmem:[%s0 + $0x40] sm:$0xff]
  %v27 = vld [vmem:[%s0 + $0x48] sm:$0xff]
  %v28 = vld [vmem:[%s0 + $0x50] sm:$0xff]
  %v29 = vld [vmem:[%s0 + $0x58] sm:$0xff]
  %v30 = vld [vmem:[%s0 + $0x60] sm:$0xff]
  %v31 = vld [vmem:[%s0 + $0x68] sm:$0xff]
  %v32 = vld [vmem:[%s0 + $0x70] sm:$0xff]
  %v33 = vld [vmem:[%s0 + $0x78] sm:$0xff]
  %v34 = vld [vmem:[%s0 + $0x80] sm:$0xff]
  %v35 = vld [vmem:[%s0 + $0x88] sm:$0xff]
  %v36 = vld [vmem:[%s0 + $0x90] sm:$0x7]
  %v37 = vld [vmem:[%s0 + $0x98] sm:$0x7]
  %39 = vset.pattern.permute.xlu0 0
  %40 = vperm.xlu0 %39, %v16
  %v41 = vpop.permute.xlu0 %40
  %44 = vset.pattern.permute.xlu0 0
  %45 = vperm.xlu0 %44, %v17
  %v46 = vpop.permute.xlu0 %45
  %vm48 = vcmask 613376
  %v50 = vsel %vm48, %v14, 0
  %v53 = vsel %vm48, %v15, 0
  %vm55 = vcmask 1042432
  %v57 = vsel %vm55, %v36, 0
  %v60 = vsel %vm55, %v37, 0
  %62 = vmatprep.subr.mxu0 0.0
  %63 = vmatpush1.msra.mxu0 0.0
  %64 = vmatprep.subr.mxu0 0.0
  %65 = vmatpush1.msra.mxu0 0.0
  %66 = vmatprep.subr.mxu0 0.0
  %67 = vmatpush1.msra.mxu0 0.0
  %68 = vmatprep.subr.mxu0 0.0
  %69 = vmatpush1.msra.mxu0 0.0
  %70 = vmatprep.subr.mxu0 0.0
  %71 = vmatpush1.msra.mxu0 0.0
  %72 = vmatprep.subr.mxu0 0.0
  %73 = vmatpush1.msra.mxu0 0.0
  %74 = vmatprep.subr.mxu0 %v60
  %75 = vmatpush1.msra.mxu0 %v57
  %76 = vmatprep.subr.mxu0 %v35
  %77 = vmatpush1.msra.mxu0 %v34
  %78 = vmatprep.subr.mxu0 %v33
  %79 = vmatpush1.msra.mxu0 %v32
  %80 = vmatprep.subr.mxu0 %v31
  %81 = vmatpush1.msra.mxu0 %v30
  %82 = vmatprep.subr.mxu0 %v29
  %83 = vmatpush1.msra.mxu0 %v28
  %84 = vmatprep.subr.mxu0 %v27
  %85 = vmatpush1.msra.mxu0 %v26
  %86 = vmatprep.subr.mxu0 %v25
  %87 = vmatpush1.msra.mxu0 %v24
  %88 = vmatprep.subr.mxu0 %v23
  %89 = vmatpush1.msra.mxu0 %v22
  %90 = vmatprep.subr.mxu0 %v21
  %91 = vmatpush1.msra.mxu0 %v20
  %92 = vmatprep.subr.mxu0 %v19
  %93 = vmatpush1.msra.mxu0 %v18
  %94 = vmatprep.subr.mxu0 0.0
  %95 = vmatpush2.msra.mxu0 0.0
  %96 = vmatprep.subr.mxu0 0.0
  %97 = vmatpush2.msra.mxu0 0.0
  %98 = vmatprep.subr.mxu0 0.0
  %99 = vmatpush2.msra.mxu0 0.0
  %100 = vmatprep.subr.mxu0 0.0
  %101 = vmatpush2.msra.mxu0 0.0
  %102 = vmatprep.subr.mxu0 0.0
  %103 = vmatpush2.msra.mxu0 0.0
  %104 = vmatprep.subr.mxu0 0.0
  %105 = vmatpush2.msra.mxu0 0.0
  %106 = vmatprep.subr.mxu0 0.0
  %107 = vmatpush2.msra.mxu0 0.0
  %108 = vmatprep.subr.mxu0 0.0
  %109 = vmatpush2.msra.mxu0 0.0
  %110 = vmatprep.subr.mxu0 0.0
  %111 = vmatpush2.msra.mxu0 0.0
  %112 = vmatprep.subr.mxu0 0.0
  %113 = vmatpush2.msra.mxu0 0.0
  %114 = vmatprep.subr.mxu0 0.0
  %115 = vmatpush2.msra.mxu0 0.0
  %116 = vmatprep.subr.mxu0 0.0
  %117 = vmatpush2.msra.mxu0 0.0
  %118 = vmatprep.subr.mxu0 0.0
  %119 = vmatpush2.msra.mxu0 0.0
  %120 = vmatprep.subr.mxu0 0.0
  %121 = vmatpush2.msra.mxu0 0.0
  %122 = vmatprep.subr.mxu0 0.0
  %123 = vmatpush2.msra.mxu0 0.0
  %124 = vmatprep.subr.mxu0 0.0
  %125 = vmatpush2.msra.mxu0 0.0
  %126 = vmatprep.mubr.f32.mxu0 0.0
  %127 = vmatmul.mubr.f32.gmra.mxu0 %v50
  %v128 = vpop.f32.mrf.mxu0
  %v129 = vadd.f32 %v41, %v128
  %v130 = vpop.f32.mrf.mxu0
  %v131 = vadd.f32 %v41, %v130
  %132 = vmatprep.mubr.f32.mxu0 0.0
  %133 = vmatmul.mubr.f32.gmra.mxu0 %v53
  %v134 = vpop.f32.mrf.mxu0
  %v135 = vadd.f32 %v46, %v134
  %v136 = vpop.f32.mrf.mxu0
  %v137 = vadd.f32 %v46, %v136
  %138 = vdwg.mxu0
  %v139 = vmax.f32 %v129, 0.0
  %v140 = vmax.f32 %v131, 0.0
  %v141 = vmax.f32 %v135, 0.0
  %v142 = vmax.f32 %v137, 0.0
  %143 = vst [vmem:[%s3] sm:$0xff] %v139
  %vm144 = vcmask 556032
  %145 = vst.msk [vmem:[%s3 + $0x8] sm:$0xff] %vm144, %v140
  %146 = vst [vmem:[%s3 + $0x10] sm:$0xff] %v141
  %147 = vst.msk [vmem:[%s3 + $0x18] sm:$0xff] %vm144, %v142
  %s148 = scalar_lea.vmem %s0, 160
  %v149 = vld [vmem:[%s148] sm:$0xff]
  %v150 = vld [vmem:[%s148 + $0x8] sm:$0xff]
  %v151 = vld [vmem:[%s148 + $0x10] sm:$0xff]
  %v152 = vld [vmem:[%s148 + $0x18] sm:$0xff]
  %v153 = vld [vmem:[%s148 + $0x20] sm:$0xff]
  %v154 = vld [vmem:[%s148 + $0x28] sm:$0xff]
  %v155 = vld [vmem:[%s148 + $0x30] sm:$0xff]
  %v156 = vld [vmem:[%s148 + $0x38] sm:$0xff]
  %v157 = vld [vmem:[%s148 + $0x40] sm:$0xff]
  %v158 = vld [vmem:[%s148 + $0x48] sm:$0xff]
  %v159 = vld [vmem:[%s148 + $0x50] sm:$0xff]
  %v160 = vld [vmem:[%s148 + $0x58] sm:$0xff]
  %v161 = vld [vmem:[%s148 + $0x60] sm:$0xff]
  %v162 = vld [vmem:[%s148 + $0x68] sm:$0xff]
  %v163 = vld [vmem:[%s148 + $0x70] sm:$0xff]
  %v164 = vld [vmem:[%s148 + $0x78] sm:$0xff]
  %v165 = vld [vmem:[%s148 + $0x80] sm:$0xff]
  %v166 = vld [vmem:[%s148 + $0x88] sm:$0xff]
  %v167 = vld [vmem:[%s148 + $0x90] sm:$0x7]
  %v168 = vld [vmem:[%s148 + $0x98] sm:$0x7]
  %v170 = vsel %vm55, %v167, 0
  %v173 = vsel %vm55, %v168, 0
  %175 = vmatprep.subr.mxu0 0.0
  %176 = vmatpush1.msra.mxu0 0.0
  %177 = vmatprep.subr.mxu0 0.0
  %178 = vmatpush1.msra.mxu0 0.0
  %179 = vmatprep.subr.mxu0 0.0
  %180 = vmatpush1.msra.mxu0 0.0
  %181 = vmatprep.subr.mxu0 0.0
  %182 = vmatpush1.msra.mxu0 0.0
  %183 = vmatprep.subr.mxu0 0.0
  %184 = vmatpush1.msra.mxu0 0.0
  %185 = vmatprep.subr.mxu0 0.0
  %186 = vmatpush1.msra.mxu0 0.0
  %187 = vmatprep.subr.mxu0 %v173
  %188 = vmatpush1.msra.mxu0 %v170
  %189 = vmatprep.subr.mxu0 %v166
  %190 = vmatpush1.msra.mxu0 %v165
  %191 = vmatprep.subr.mxu0 %v164
  %192 = vmatpush1.msra.mxu0 %v163
  %193 = vmatprep.subr.mxu0 %v162
  %194 = vmatpush1.msra.mxu0 %v161
  %195 = vmatprep.subr.mxu0 %v160
  %196 = vmatpush1.msra.mxu0 %v159
  %197 = vmatprep.subr.mxu0 %v158
  %198 = vmatpush1.msra.mxu0 %v157
  %199 = vmatprep.subr.mxu0 %v156
  %200 = vmatpush1.msra.mxu0 %v155
  %201 = vmatprep.subr.mxu0 %v154
  %202 = vmatpush1.msra.mxu0 %v153
  %203 = vmatprep.subr.mxu0 %v152
  %204 = vmatpush1.msra.mxu0 %v151
  %205 = vmatprep.subr.mxu0 %v150
  %206 = vmatpush1.msra.mxu0 %v149
  %207 = vmatprep.subr.mxu0 0.0
  %208 = vmatpush2.msra.mxu0 0.0
  %209 = vmatprep.subr.mxu0 0.0
  %210 = vmatpush2.msra.mxu0 0.0
  %211 = vmatprep.subr.mxu0 0.0
  %212 = vmatpush2.msra.mxu0 0.0
  %213 = vmatprep.subr.mxu0 0.0
  %214 = vmatpush2.msra.mxu0 0.0
  %215 = vmatprep.subr.mxu0 0.0
  %216 = vmatpush2.msra.mxu0 0.0
  %217 = vmatprep.subr.mxu0 0.0
  %218 = vmatpush2.msra.mxu0 0.0
  %219 = vmatprep.subr.mxu0 0.0
  %220 = vmatpush2.msra.mxu0 0.0
  %221 = vmatprep.subr.mxu0 0.0
  %222 = vmatpush2.msra.mxu0 0.0
  %223 = vmatprep.subr.mxu0 0.0
  %224 = vmatpush2.msra.mxu0 0.0
  %225 = vmatprep.subr.mxu0 0.0
  %226 = vmatpush2.msra.mxu0 0.0
  %227 = vmatprep.subr.mxu0 0.0
  %228 = vmatpush2.msra.mxu0 0.0
  %229 = vmatprep.subr.mxu0 0.0
  %230 = vmatpush2.msra.mxu0 0.0
  %231 = vmatprep.subr.mxu0 0.0
  %232 = vmatpush2.msra.mxu0 0.0
  %233 = vmatprep.subr.mxu0 0.0
  %234 = vmatpush2.msra.mxu0 0.0
  %235 = vmatprep.subr.mxu0 0.0
  %236 = vmatpush2.msra.mxu0 0.0
  %237 = vmatprep.subr.mxu0 0.0
  %238 = vmatpush2.msra.mxu0 0.0
  %239 = vmatprep.mubr.f32.mxu0 0.0
  %240 = vmatmul.mubr.f32.gmra.mxu0 %v50
  %v241 = vpop.f32.mrf.mxu0
  %v242 = vadd.f32 %v41, %v241
  %v243 = vpop.f32.mrf.mxu0
  %v244 = vadd.f32 %v41, %v243
  %245 = vmatprep.mubr.f32.mxu0 0.0
  %246 = vmatmul.mubr.f32.gmra.mxu0 %v53
  %v247 = vpop.f32.mrf.mxu0
  %v248 = vadd.f32 %v46, %v247
  %v249 = vpop.f32.mrf.mxu0
  %v250 = vadd.f32 %v46, %v249
  %251 = vdwg.mxu0
  %v252 = vmax.f32 %v242, 0.0
  %v253 = vmax.f32 %v244, 0.0
  %v254 = vmax.f32 %v248, 0.0
  %v255 = vmax.f32 %v250, 0.0
  %s256 = scalar_lea.vmem %s3, 32
  %257 = vst [vmem:[%s256] sm:$0xff] %v252
  %258 = vst.msk [vmem:[%s256 + $0x8] sm:$0xff] %vm144, %v253
  %259 = vst [vmem:[%s256 + $0x10] sm:$0xff] %v254
  %260 = vst.msk [vmem:[%s256 + $0x18] sm:$0xff] %vm144, %v255
  // Predicated region
  $region14: #{conv2d_relu.1} parent=0 // pred_check
    _
  $region15: #{conv2d_relu.1} parent=0 // pred_check_branch
    %262 = sbr.rel (0) target = $region17
  $region16: #{conv2d_relu.1} parent=0 // pred_region
    _
  $region17: #{conv2d_relu.1} parent=0 // pred_fallthru
    _
  // Predicated region
  $region18: #{conv2d_relu.1} parent=0 // pred_check
    _
  $region19: #{conv2d_relu.1} parent=0 // pred_check_branch
    %264 = sbr.rel (0) target = $region21
  $region20: #{conv2d_relu.1} parent=0 // pred_region
    _
  $region21: #{conv2d_relu.1} parent=0 // pred_fallthru
    _

</llo_original>
